<compile_context>
chip_gen: v6e
topology: v6e:2x2x1
jax: 0.10.0
libtpu: 0.0.40
codegen_flags: <defaults>
</compile_context>

<pallas_src>
import jax
import jax.numpy as jnp
from jax.experimental import pallas as pl
from jax.experimental.pallas import tpu as pltpu


def _inner_product_kernel(left_ref, right_ref, out_ref):
    # left_ref : (TB, F)      VMEM
    # right_ref: (TB, F, TD)  VMEM
    # out_ref  : (TB, TD)     VMEM
    l3 = left_ref[...][:, None, :]                     # (TB, 1, F)
    # Batched matmul on the MXU, f32 accumulation (no operand upcast).
    acc = jnp.einsum(
        "bqf,bfd->bqd",
        l3,
        right_ref[...],
        preferred_element_type=jnp.float32,
    )                                                  # (TB, 1, TD) f32
    out_ref[...] = acc[:, 0, :].astype(out_ref.dtype)  # (TB, TD)


def _pick_tiles(B, F, D, itemsize, *, tb_cap=128, td_cap=512,
                right_block_budget=4 * 1024 * 1024):
    """Tile sizes that are legal without padding and fit a VMEM budget.

    Every chosen block dim is either a multiple of the (8, 128) granule or
    exactly equal to the full array dim, and never larger than the array dim,
    so no wrapper-side jnp.pad is needed.
    """
    # Lane (last) dim: full D if small, else a 128-multiple cap (remainder
    # block handled by Pallas partial-block masking).
    td = D if D <= td_cap else td_cap
    # Batch/sublane dim: full B, or the largest multiple of 8 that keeps the
    # right-operand block (double-buffered) within the VMEM budget.
    fit = max(1, right_block_budget // max(1, F * td * itemsize))
    tb = min(B, tb_cap, max(8, (fit // 8) * 8))
    return tb, td


def feature_vec_inner_product(left_feature, right_feature):
    """left_feature: (B, F, 1, 1), right_feature: (B, F, 1, D) -> (B, D)."""
    # Explicit-axis squeeze (free reshapes): matches the documented shapes and
    # is safe even if B == 1, F == 1 or D == 1.
    left = jnp.squeeze(left_feature, axis=(2, 3))   # (B, F)
    right = jnp.squeeze(right_feature, axis=2)      # (B, F, D)

    B, F = left.shape
    D = right.shape[-1]
    out_dtype = jnp.result_type(left.dtype, right.dtype)

    tb, td = _pick_tiles(B, F, D, right.dtype.itemsize)
    grid = (pl.cdiv(B, tb), pl.cdiv(D, td))

    cost = pl.CostEstimate(
        flops=2 * B * F * D,
        transcendentals=0,
        bytes_accessed=(
            left.size * left.dtype.itemsize
            + right.size * right.dtype.itemsize
            + B * D * jnp.dtype(out_dtype).itemsize
        ),
    )

    return pl.pallas_call(
        _inner_product_kernel,
        out_shape=jax.ShapeDtypeStruct((B, D), out_dtype),
        grid_spec=pltpu.PrefetchScalarGridSpec(
            num_scalar_prefetch=0,
            grid=grid,
            in_specs=[
                pl.BlockSpec((tb, F), lambda b, d: (b, 0)),
                pl.BlockSpec((tb, F, td), lambda b, d: (b, 0, d)),
            ],
            out_specs=pl.BlockSpec((tb, td), lambda b, d: (b, d)),
        ),
        compiler_params=pltpu.CompilerParams(
            dimension_semantics=("parallel", "parallel"),
        ),
        cost_estimate=cost,
    )(left, right)


if __name__ == "__main__":
    # Module has no parameters (__init__ is empty) — only inputs are needed.
    B, F, D = 2, 64, 201
    key = jax.random.PRNGKey(0)
    k_left, k_right = jax.random.split(key)
    left_feature = jax.random.normal(k_left, (B, F, 1, 1), dtype=jnp.float32)
    right_feature = jax.random.normal(k_right, (B, F, 1, D), dtype=jnp.float32)

    out = feature_vec_inner_product(left_feature, right_feature)
    out = jax.block_until_ready(out)

    # Reference: same semantics as the torch.einsum in the module.
    ref = jnp.einsum(
        "bf,bfd->bd",
        jnp.squeeze(left_feature, axis=(2, 3)),
        jnp.squeeze(right_feature, axis=2),
    )
    assert out.shape == (B, D), out.shape
    assert jnp.allclose(out, ref, atol=1e-4, rtol=1e-4), float(
        jnp.max(jnp.abs(out - ref))
    )

    print("KERNEL_OK")
</pallas_src>

<mosaic_0001>
module attributes {stable_mosaic.version = 11 : i64} {
  func.func @_inner_product_kernel(%arg0: i32, %arg1: i32, %arg2: memref<2x64xf32, #tpu.memory_space<vmem>>, %arg3: memref<2x64x201xf32, #tpu.memory_space<vmem>>, %arg4: memref<2x201xf32, #tpu.memory_space<vmem>>) attributes {dimension_semantics = [#tpu.dimension_semantics<parallel>, #tpu.dimension_semantics<parallel>], iteration_bounds = array<i64: 1, 1>, scalar_prefetch = 0 : i64, scratch_operands = 0 : i64, tpu.core_type = #tpu.core_type<tc>, window_params = [{transform_indices = @transform_0, window_bounds = array<i64: 2, 64>}, {transform_indices = @transform_1, window_bounds = array<i64: 2, 64, 201>}, {transform_indices = @transform_2, window_bounds = array<i64: 2, 201>}]} {
    %c0 = arith.constant 0 : index
    %c0_0 = arith.constant 0 : index
    %0 = vector.load %arg2[%c0, %c0_0] : memref<2x64xf32, #tpu.memory_space<vmem>>, vector<2x64xf32>
    %1 = vector.shape_cast %0 : vector<2x64xf32> to vector<2x1x64xf32>
    %c0_1 = arith.constant 0 : index
    %c0_2 = arith.constant 0 : index
    %c0_3 = arith.constant 0 : index
    %2 = vector.load %arg3[%c0_1, %c0_2, %c0_3] : memref<2x64x201xf32, #tpu.memory_space<vmem>>, vector<2x64x201xf32>
    "tpu.trace_start"() <{level = 10 : i32, message = "bqf,bfd->bqd"}> : () -> ()
    %cst = arith.constant dense<0.000000e+00> : vector<2x1x201xf32>
    %3 = tpu.matmul %1, %2, %cst {dimension_numbers = #tpu.dot_dimension_numbers<[2], [1], [1], [2], [0, 0, 0, 1, 1, 2], [0], [0]>} : vector<2x1x64xf32>, vector<2x64x201xf32>, vector<2x1x201xf32> -> vector<2x1x201xf32>
    "tpu.trace_stop"() : () -> ()
    %4 = vector.shape_cast %3 : vector<2x1x201xf32> to vector<2x201xf32>
    %c0_4 = arith.constant 0 : index
    %c0_5 = arith.constant 0 : index
    %5 = vector.load %arg4[%c0_4, %c0_5] : memref<2x201xf32, #tpu.memory_space<vmem>>, vector<2x201xf32>
    tpu.vector_store %arg4[%c0_4, %c0_5], %4 {strides = array<i32>} : memref<2x201xf32, #tpu.memory_space<vmem>>, vector<2x201xf32>,
    return
  }
  func.func @transform_0(%arg0: i32, %arg1: i32) -> (i32, i32) {
    %c0_i32 = arith.constant 0 : i32
    %c0_i32_0 = arith.constant 0 : i32
    return %arg0, %c0_i32 : i32, i32
  }
  func.func @transform_1(%arg0: i32, %arg1: i32) -> (i32, i32, i32) {
    %c0_i32 = arith.constant 0 : i32
    %c0_i32_0 = arith.constant 0 : i32
    return %arg0, %c0_i32, %arg1 : i32, i32, i32
  }
  func.func @transform_2(%arg0: i32, %arg1: i32) -> (i32, i32) {
    %c0_i32 = arith.constant 0 : i32
    return %arg0, %arg1 : i32, i32
  }
}

</mosaic_0001>

<llo_original>
// kernel: tpu_custom_call.1
$region0: #{tpu_custom_call.1}
  #allocation0 [shape = 'u32[]', space=smem, size = 0x4, offset = 0x4, fixed_abs, tag = 'smem constant byte address 0x4 - core index']
  #allocation1 [shape = 'u32[144,128]{1,0:T(1,128)}', space=vmem, size = 0x12000, scoped, tag = 'internal scratch']
  %s0 = inlined_call_operand.hbm [shape: f32[2,64], index: 0, kind: input, shape index: {}]
  %s1 = inlined_call_operand.hbm [shape: f32[2,64,201], index: 1, kind: input, shape index: {}]
  %s2 = inlined_call_operand.hbm [shape: f32[2,201], index: 2, kind: output, shape index: {}]
  %s3 = sld [smem:[#allocation0]]
  $region26: #{tpu_custom_call.1} parent=0
    _
  %s5 = ssub.s32 1, %s3
  %s6 = scalar_select 0, %s5, %s3
  $region1: #{tpu_custom_call.1} parent=0
    #allocation2 [shape = 'u8[1024]{0}', space=vmem, size = 0x400, scoped, tag = 'input window, operand 0, single buffered']
    #allocation3 [shape = 's32[1]{0}', space=sflag, size = 0x4, scoped, tag = 'scoped memory for tpu_custom_call.1']
    #allocation4 [shape = 's32[1]{0}', space=sflag, size = 0x4, scoped, tag = 'scoped memory for tpu_custom_call.1']
    #allocation5 [shape = 'u8[131072]{0}', space=vmem, size = 0x20000, scoped, tag = 'input window, operand 1, single buffered']
    #allocation6 [shape = 's32[1]{0}', space=sflag, size = 0x4, scoped, tag = 'scoped memory for tpu_custom_call.1']
    #allocation7 [shape = 'u8[2048]{0}', space=vmem, size = 0x800, scoped, tag = 'output window, operand 0, single buffered']
    %7 = vsyncpa [#allocation3], 0
    %8 = vsyncpa [#allocation6], 0
    %9 = vsyncpa [#allocation4], 0
    // Predicated region
    $region2: #{tpu_custom_call.1} parent=1 // pred_check
      _
    $region3: #{tpu_custom_call.1} parent=1 // pred_check_branch
      %11 = sbr.rel (0) target = $region5
    $region4: #{tpu_custom_call.1} parent=1 // pred_region
      %s13 = ssub.s32 32, 32
      %14 = vsyncadd [#allocation3], %s13
      %s16 = sshll.u32 [#allocation2], 4
      %s17 = int_to_ptr.vmem [resolvable:$true] %s16
      %19 = dma.hbm_to_vmem [thread:$0]  %s0, 32, %s17, [#allocation3]
    $region5: #{tpu_custom_call.1} parent=1 // pred_fallthru
      _
    // Predicated region
    $region6: #{tpu_custom_call.1} parent=1 // pred_check
      _
    $region7: #{tpu_custom_call.1} parent=1 // pred_check_branch
      %21 = sbr.rel (0) target = $region9
    $region8: #{tpu_custom_call.1} parent=1 // pred_region
      %s23 = ssub.s32 4096, 4096
      %24 = vsyncadd [#allocation6], %s23
      %s25 = sshll.u32 [#allocation5], 4
      %s26 = int_to_ptr.vmem [resolvable:$true] %s25
      %31 = dma.hbm_to_vmem [thread:$0]  %s1, 4096, %s26, [#allocation6], 256, 256, 16
    $region9: #{tpu_custom_call.1} parent=1 // pred_fallthru
      _
    // Predicated region
    $region10: #{tpu_custom_call.1} parent=1 // pred_check
      _
    $region11: #{tpu_custom_call.1} parent=1 // pred_check_branch
      %33 = sbr.rel (0) target = $region13
    $region12: #{tpu_custom_call.1} parent=1 // pred_region
      %34 = dma.done [#allocation3], 32
    $region13: #{tpu_custom_call.1} parent=1 // pred_fallthru
      _
    // Predicated region
    $region14: #{tpu_custom_call.1} parent=1 // pred_check
      _
    $region15: #{tpu_custom_call.1} parent=1 // pred_check_branch
      %36 = sbr.rel (0) target = $region17
    $region16: #{tpu_custom_call.1} parent=1 // pred_region
      %37 = dma.done [#allocation6], 4096
    $region17: #{tpu_custom_call.1} parent=1 // pred_fallthru
      _
    %v38 = vld [vmem:[#allocation2] sm:$0x3]
    %v41 = vunpack.c.l.s4 1966171168
    %v42 = vunpack.c.0.s8 %v41
    %v43 = vlaneseq
    %v44 = vshrl.u32 %v43, 7
    %v45 = vsub.s32 %v42, %v44
    %v46 = vrot.slane %v38, %v45
    %v47 = vcombine.high %v46, %v46
    %v49 = vunpack.c.l.s4 1966171168
    %v50 = vunpack.c.0.s8 %v49
    %v51 = vlaneseq
    %v52 = vshrl.u32 %v51, 7
    %v53 = vsub.s32 %v50, %v52
    %v54 = vrot.slane %v46, %v53
    %v56 = vunpack.c.l.s4 1966171168
    %v57 = vunpack.c.0.s8 %v56
    %v58 = vlaneseq
    %v59 = vshrl.u32 %v58, 7
    %v60 = vsub.s32 %v57, %v59
    %v61 = vrot.slane %v47, %v60
    %v62 = vld [vmem:[#allocation5] sm:$0xff]
    %v63 = vld [vmem:[#allocation5 + $0x8] sm:$0xff]
    %v64 = vld [vmem:[#allocation5 + $0x10] sm:$0xff]
    %v65 = vld [vmem:[#allocation5 + $0x18] sm:$0xff]
    %v66 = vld [vmem:[#allocation5 + $0x20] sm:$0xff]
    %v67 = vld [vmem:[#allocation5 + $0x28] sm:$0xff]
    %v68 = vld [vmem:[#allocation5 + $0x30] sm:$0xff]
    %v69 = vld [vmem:[#allocation5 + $0x38] sm:$0xff]
    %v70 = vld [vmem:[#allocation5 + $0x40] sm:$0xff]
    %v71 = vld [vmem:[#allocation5 + $0x48] sm:$0xff]
    %v72 = vld [vmem:[#allocation5 + $0x50] sm:$0xff]
    %v73 = vld [vmem:[#allocation5 + $0x58] sm:$0xff]
    %v74 = vld [vmem:[#allocation5 + $0x60] sm:$0xff]
    %v75 = vld [vmem:[#allocation5 + $0x68] sm:$0xff]
    %v76 = vld [vmem:[#allocation5 + $0x70] sm:$0xff]
    %v77 = vld [vmem:[#allocation5 + $0x78] sm:$0xff]
    %v78 = vld [vmem:[#allocation5 + $0x80] sm:$0xff]
    %v79 = vld [vmem:[#allocation5 + $0x88] sm:$0xff]
    %v80 = vld [vmem:[#allocation5 + $0x90] sm:$0xff]
    %v81 = vld [vmem:[#allocation5 + $0x98] sm:$0xff]
    %v82 = vld [vmem:[#allocation5 + $0xa0] sm:$0xff]
    %v83 = vld [vmem:[#allocation5 + $0xa8] sm:$0xff]
    %v84 = vld [vmem:[#allocation5 + $0xb0] sm:$0xff]
    %v85 = vld [vmem:[#allocation5 + $0xb8] sm:$0xff]
    %v86 = vld [vmem:[#allocation5 + $0xc0] sm:$0xff]
    %v87 = vld [vmem:[#allocation5 + $0xc8] sm:$0xff]
    %v88 = vld [vmem:[#allocation5 + $0xd0] sm:$0xff]
    %v89 = vld [vmem:[#allocation5 + $0xd8] sm:$0xff]
    %v90 = vld [vmem:[#allocation5 + $0xe0] sm:$0xff]
    %v91 = vld [vmem:[#allocation5 + $0xe8] sm:$0xff]
    %v92 = vld [vmem:[#allocation5 + $0xf0] sm:$0xff]
    %v93 = vld [vmem:[#allocation5 + $0xf8] sm:$0xff]
    %vm94 = vcmask 523264
    %v95 = vsel %vm94, %v54, 0
    %97 = vmatprep.subr.mxu0 0.0
    %98 = vmatpush1.msra.mxu0 0.0
    %99 = vmatprep.subr.mxu0 0.0
    %100 = vmatpush1.msra.mxu0 0.0
    %101 = vmatprep.subr.mxu0 0.0
    %102 = vmatpush1.msra.mxu0 0.0
    %103 = vmatprep.subr.mxu0 0.0
    %104 = vmatpush1.msra.mxu0 0.0
    %105 = vmatprep.subr.mxu0 0.0
    %106 = vmatpush1.msra.mxu0 0.0
    %107 = vmatprep.subr.mxu0 0.0
    %108 = vmatpush1.msra.mxu0 0.0
    %109 = vmatprep.subr.mxu0 0.0
    %110 = vmatpush1.msra.mxu0 0.0
    %111 = vmatprep.subr.mxu0 0.0
    %112 = vmatpush1.msra.mxu0 0.0
    %113 = vmatprep.subr.mxu0 %v77
    %114 = vmatpush1.msra.mxu0 %v76
    %115 = vmatprep.subr.mxu0 %v75
    %116 = vmatpush1.msra.mxu0 %v74
    %117 = vmatprep.subr.mxu0 %v73
    %118 = vmatpush1.msra.mxu0 %v72
    %119 = vmatprep.subr.mxu0 %v71
    %120 = vmatpush1.msra.mxu0 %v70
    %121 = vmatprep.subr.mxu0 %v69
    %122 = vmatpush1.msra.mxu0 %v68
    %123 = vmatprep.subr.mxu0 %v67
    %124 = vmatpush1.msra.mxu0 %v66
    %125 = vmatprep.subr.mxu0 %v65
    %126 = vmatpush1.msra.mxu0 %v64
    %127 = vmatprep.subr.mxu0 %v63
    %128 = vmatpush1.msra.mxu0 %v62
    %129 = vmatprep.subr.mxu0 0.0
    %130 = vmatpush2.msra.mxu0 0.0
    %131 = vmatprep.subr.mxu0 0.0
    %132 = vmatpush2.msra.mxu0 0.0
    %133 = vmatprep.subr.mxu0 0.0
    %134 = vmatpush2.msra.mxu0 0.0
    %135 = vmatprep.subr.mxu0 0.0
    %136 = vmatpush2.msra.mxu0 0.0
    %137 = vmatprep.subr.mxu0 0.0
    %138 = vmatpush2.msra.mxu0 0.0
    %139 = vmatprep.subr.mxu0 0.0
    %140 = vmatpush2.msra.mxu0 0.0
    %141 = vmatprep.subr.mxu0 0.0
    %142 = vmatpush2.msra.mxu0 0.0
    %143 = vmatprep.subr.mxu0 0.0
    %144 = vmatpush2.msra.mxu0 0.0
    %145 = vmatprep.subr.mxu0 0.0
    %146 = vmatpush2.msra.mxu0 0.0
    %147 = vmatprep.subr.mxu0 0.0
    %148 = vmatpush2.msra.mxu0 0.0
    %149 = vmatprep.subr.mxu0 0.0
    %150 = vmatpush2.msra.mxu0 0.0
    %151 = vmatprep.subr.mxu0 0.0
    %152 = vmatpush2.msra.mxu0 0.0
    %153 = vmatprep.subr.mxu0 0.0
    %154 = vmatpush2.msra.mxu0 0.0
    %155 = vmatprep.subr.mxu0 0.0
    %156 = vmatpush2.msra.mxu0 0.0
    %157 = vmatprep.subr.mxu0 0.0
    %158 = vmatpush2.msra.mxu0 0.0
    %159 = vmatprep.subr.mxu0 0.0
    %160 = vmatpush2.msra.mxu0 0.0
    %161 = vmatprep.mubr.f32.mxu0 0.0
    %162 = vmatmul.mubr.f32.gmra.mxu0 %v95
    %v163 = vpop.f32.mrf.mxu0
    %v164 = vadd.f32 0.0, %v163
    %v165 = vpop.f32.mrf.mxu0
    %v166 = vadd.f32 0.0, %v165
    %167 = vdwg.mxu0
    %v168 = vsel %vm94, %v61, 0
    %170 = vmatprep.subr.mxu0 0.0
    %171 = vmatpush1.msra.mxu0 0.0
    %172 = vmatprep.subr.mxu0 0.0
    %173 = vmatpush1.msra.mxu0 0.0
    %174 = vmatprep.subr.mxu0 0.0
    %175 = vmatpush1.msra.mxu0 0.0
    %176 = vmatprep.subr.mxu0 0.0
    %177 = vmatpush1.msra.mxu0 0.0
    %178 = vmatprep.subr.mxu0 0.0
    %179 = vmatpush1.msra.mxu0 0.0
    %180 = vmatprep.subr.mxu0 0.0
    %181 = vmatpush1.msra.mxu0 0.0
    %182 = vmatprep.subr.mxu0 0.0
    %183 = vmatpush1.msra.mxu0 0.0
    %184 = vmatprep.subr.mxu0 0.0
    %185 = vmatpush1.msra.mxu0 0.0
    %186 = vmatprep.subr.mxu0 %v93
    %187 = vmatpush1.msra.mxu0 %v92
    %188 = vmatprep.subr.mxu0 %v91
    %189 = vmatpush1.msra.mxu0 %v90
    %190 = vmatprep.subr.mxu0 %v89
    %191 = vmatpush1.msra.mxu0 %v88
    %192 = vmatprep.subr.mxu0 %v87
    %193 = vmatpush1.msra.mxu0 %v86
    %194 = vmatprep.subr.mxu0 %v85
    %195 = vmatpush1.msra.mxu0 %v84
    %196 = vmatprep.subr.mxu0 %v83
    %197 = vmatpush1.msra.mxu0 %v82
    %198 = vmatprep.subr.mxu0 %v81
    %199 = vmatpush1.msra.mxu0 %v80
    %200 = vmatprep.subr.mxu0 %v79
    %201 = vmatpush1.msra.mxu0 %v78
    %202 = vmatprep.subr.mxu0 0.0
    %203 = vmatpush2.msra.mxu0 0.0
    %204 = vmatprep.subr.mxu0 0.0
    %205 = vmatpush2.msra.mxu0 0.0
    %206 = vmatprep.subr.mxu0 0.0
    %207 = vmatpush2.msra.mxu0 0.0
    %208 = vmatprep.subr.mxu0 0.0
    %209 = vmatpush2.msra.mxu0 0.0
    %210 = vmatprep.subr.mxu0 0.0
    %211 = vmatpush2.msra.mxu0 0.0
    %212 = vmatprep.subr.mxu0 0.0
    %213 = vmatpush2.msra.mxu0 0.0
    %214 = vmatprep.subr.mxu0 0.0
    %215 = vmatpush2.msra.mxu0 0.0
    %216 = vmatprep.subr.mxu0 0.0
    %217 = vmatpush2.msra.mxu0 0.0
    %218 = vmatprep.subr.mxu0 0.0
    %219 = vmatpush2.msra.mxu0 0.0
    %220 = vmatprep.subr.mxu0 0.0
    %221 = vmatpush2.msra.mxu0 0.0
    %222 = vmatprep.subr.mxu0 0.0
    %223 = vmatpush2.msra.mxu0 0.0
    %224 = vmatprep.subr.mxu0 0.0
    %225 = vmatpush2.msra.mxu0 0.0
    %226 = vmatprep.subr.mxu0 0.0
    %227 = vmatpush2.msra.mxu0 0.0
    %228 = vmatprep.subr.mxu0 0.0
    %229 = vmatpush2.msra.mxu0 0.0
    %230 = vmatprep.subr.mxu0 0.0
    %231 = vmatpush2.msra.mxu0 0.0
    %232 = vmatprep.subr.mxu0 0.0
    %233 = vmatpush2.msra.mxu0 0.0
    %234 = vmatprep.mubr.f32.mxu0 0.0
    %235 = vmatmul.mubr.f32.gmra.mxu0 %v168
    %v236 = vpop.f32.mrf.mxu0
    %v237 = vadd.f32 0.0, %v236
    %v238 = vpop.f32.mrf.mxu0
    %v239 = vadd.f32 0.0, %v238
    %240 = vdwg.mxu0
    %v245 = vcombine.low %v164, %v166
    %v247 = vunpack.c.l.s4 1983009808
    %v248 = vunpack.c.0.s8 %v247
    %v249 = vlaneseq
    %v250 = vshrl.u32 %v249, 7
    %v251 = vsub.s32 %v248, %v250
    %v252 = vrot.slane %v245, %v251
    %v253 = vcombine.low %v237, %v239
    %v255 = vunpack.c.l.s4 1983009808
    %v256 = vunpack.c.0.s8 %v255
    %v257 = vlaneseq
    %v258 = vshrl.u32 %v257, 7
    %v259 = vsub.s32 %v256, %v258
    %v260 = vrot.slane %v253, %v259
    %vm261 = vcmask 1044484
    %v262 = vsel %vm261, %v252, %v252
    %vm263 = vcmask 1046534
    %v264 = vsel %vm263, %v252, %v262
    %v265 = vrot.slane %v260, 7
    %vm266 = vcmask 1041409
    %v267 = vsel %vm266, %v265, %v264
    %vm268 = vcmask 1043459
    %v269 = vsel %vm268, %v265, %v267
    %vm270 = vcmask 1045509
    %v271 = vsel %vm270, %v265, %v269
    %vm272 = vcmask 1047559
    %v273 = vsel %vm272, %v265, %v271
    %vm275 = vcmask 1041408
    %vm276 = vcmask 592898
    %vm277 = vmor %vm276, %vm275
    %278 = vst.msk [vmem:[#allocation7] sm:$0xf] %vm277, %v273
    // Predicated region
    $region18: #{tpu_custom_call.1} parent=1 // pred_check
      _
    $region19: #{tpu_custom_call.1} parent=1 // pred_check_branch
      %280 = sbr.rel (0) target = $region21
    $region20: #{tpu_custom_call.1} parent=1 // pred_region
      %s282 = ssub.s32 64, 64
      %283 = vsyncadd [#allocation4], %s282
      %s285 = sshll.u32 [#allocation7], 4
      %s286 = int_to_ptr.vmem [resolvable:$true] %s285
      %288 = dma.vmem_to_hbm [thread:$0]  %s286, 64, %s2, [#allocation4]
    $region21: #{tpu_custom_call.1} parent=1 // pred_fallthru
      _
    // Predicated region
    $region22: #{tpu_custom_call.1} parent=1 // pred_check
      _
    $region23: #{tpu_custom_call.1} parent=1 // pred_check_branch
      %290 = sbr.rel (0) target = $region25
    $region24: #{tpu_custom_call.1} parent=1 // pred_region
      %291 = dma.done [#allocation4], 64
    $region25: #{tpu_custom_call.1} parent=1 // pred_fallthru
      _
    %292 = vsyncpa [#allocation3], 1
    %293 = vsyncpa [#allocation6], 1
    %294 = vsyncpa [#allocation4], 1

</llo_original>
